<compile_context>
chip_gen: v5e
topology: v5e:2x2
jax: 0.10.0
libtpu: 0.0.40
codegen_flags: <defaults>
</compile_context>

<pallas_src>
import functools

import jax
import jax.numpy as jnp
from jax.experimental import pallas as pl
from jax.experimental.pallas import tpu as pltpu


# ---------------------------------------------------------------------------
# Kernel 1: input->hidden conv, hoisted off the recurrence (fully parallel).
# ---------------------------------------------------------------------------
def _i2h_conv_kernel(x_ref, wi_ref, bi_ref, o_ref, *, pad, mm_dtype):
    """rzn_i = Conv1d(x) + b_i for a block of Tb timesteps (no recurrence).

    x_ref : (1, Tb, Cin, Lout)  lane-dense flat layer input (junk cols are 0)
    wi_ref: (3C, K*Cin)         weights, [o, k*Cin + c] = W[o, c, k]
    bi_ref: (3C, 1)             bias (f32)
    o_ref : (1, Tb, 3C, Lout)   f32 input pre-activations
    """
    _, tb, cin, lout = x_ref.shape
    k_taps = wi_ref.shape[1] // cin
    wi = wi_ref[...]
    bi = bi_ref[...]
    for t in range(tb):                       # static unroll (Tb is small)
        x = x_ref[0, t]                       # (Cin, Lout)
        if pad > 0:                           # pad along lanes in VMEM (cheap)
            z = jnp.zeros((cin, pad), x.dtype)
            xp = jnp.concatenate([z, x, z], axis=-1)      # (Cin, Lout + 2*pad)
        else:
            xp = x
        if k_taps > 1:                        # im2col: single fused matmul
            cols = jnp.concatenate(
                [xp[:, k:k + lout] for k in range(k_taps)], axis=0)
        else:
            cols = xp[:, :lout]
        rzn = jnp.dot(wi, cols.astype(mm_dtype),
                      preferred_element_type=jnp.float32) + bi
        o_ref[0, t] = rzn.astype(o_ref.dtype)


def _i2h_conv(x, wi2, bi2, *, pad, time_block):
    nb, t_total, cin, lout = x.shape
    c3, kcin = wi2.shape
    kern = functools.partial(_i2h_conv_kernel, pad=pad, mm_dtype=wi2.dtype)
    return pl.pallas_call(
        kern,
        out_shape=jax.ShapeDtypeStruct((nb, t_total, c3, lout), jnp.float32),
        grid_spec=pltpu.PrefetchScalarGridSpec(
            num_scalar_prefetch=0,
            grid=(nb, t_total // time_block),
            in_specs=[
                pl.BlockSpec((1, time_block, cin, lout),
                             lambda b, t: (b, t, 0, 0)),
                pl.BlockSpec((c3, kcin), lambda b, t: (0, 0)),
                pl.BlockSpec((c3, 1), lambda b, t: (0, 0)),
            ],
            out_specs=pl.BlockSpec((1, time_block, c3, lout),
                                   lambda b, t: (b, t, 0, 0)),
        ),
        compiler_params=pltpu.CompilerParams(
            dimension_semantics=("parallel", "parallel")),
    )(x, wi2, bi2)


# ---------------------------------------------------------------------------
# Kernel 2: the serialized GRU recurrence (h2h conv + gates only).
# ---------------------------------------------------------------------------
def _gru_recurrent_kernel(rzn_i_ref, wh_ref, bh_ref, mask_ref, o_ref, h_ref,
                          *, pad, mm_dtype):
    """GRU recurrence over one block of Tb timesteps.

    rzn_i_ref: (1, Tb, 3C, Lout)  precomputed input pre-activations (f32)
    wh_ref   : (3C, K*C)          h2h weights, [o, k*C + c] = W[o, c, k]
    bh_ref   : (3C, 1)            h2h bias (f32)
    mask_ref : (1, Lout)          1.0 at valid columns, 0.0 at inter-batch pads
    o_ref    : (1, Tb, C, Lout)   per-step hidden states (layer output)
    h_ref    : VMEM (C, Lout+2*pad) f32, width-padded hidden state carried
               across time blocks (zeroed once per batch chunk).
    """
    @pl.when(pl.program_id(1) == 0)
    def _():
        h_ref[...] = jnp.zeros_like(h_ref)

    _, tb, c3, lout = rzn_i_ref.shape
    c = c3 // 3
    k_taps = wh_ref.shape[1] // c
    wh = wh_ref[...]
    bh = bh_ref[...]
    mask = mask_ref[...]

    for t in range(tb):                       # static unroll of the time block
        h_full = h_ref[...]                   # (C, L) padded hidden state (f32)
        if k_taps > 1:                        # im2col: one fused h2h matmul
            cols = jnp.concatenate(
                [h_full[:, k:k + lout] for k in range(k_taps)], axis=0)
        else:
            cols = h_full[:, :lout]
        rzn_h = jnp.dot(wh, cols.astype(mm_dtype),
                        preferred_element_type=jnp.float32) + bh
        rzn_i = rzn_i_ref[0, t].astype(jnp.float32)       # (3C, Lout)

        # r and z share one fused sigmoid pass (EUP slot).
        rz = jax.nn.sigmoid(rzn_i[:2 * c] + rzn_h[:2 * c])
        r = rz[:c]
        z = rz[c:]
        n = jnp.tanh(rzn_i[2 * c:] + r * rzn_h[2 * c:])
        h_prev = h_full[:, pad:pad + lout]
        h_next = (n + z * (h_prev - n)) * mask            # keep pad cols zero

        o_ref[0, t] = h_next.astype(o_ref.dtype)
        h_ref[:, pad:pad + lout] = h_next                 # interior write only


def _gru_recurrence(rzn_i, wh2, bh2, mask, *, pad, time_block, out_dtype):
    nb, t_total, c3, lout = rzn_i.shape
    c = c3 // 3
    kc = wh2.shape[1]
    kern = functools.partial(_gru_recurrent_kernel, pad=pad, mm_dtype=wh2.dtype)
    return pl.pallas_call(
        kern,
        out_shape=jax.ShapeDtypeStruct((nb, t_total, c, lout), out_dtype),
        grid_spec=pltpu.PrefetchScalarGridSpec(
            num_scalar_prefetch=0,
            grid=(nb, t_total // time_block),
            in_specs=[
                pl.BlockSpec((1, time_block, c3, lout),
                             lambda b, t: (b, t, 0, 0)),
                pl.BlockSpec((c3, kc), lambda b, t: (0, 0)),
                pl.BlockSpec((c3, 1), lambda b, t: (0, 0)),
                pl.BlockSpec((1, lout), lambda b, t: (0, 0)),
            ],
            out_specs=pl.BlockSpec((1, time_block, c, lout),
                                   lambda b, t: (b, t, 0, 0)),
            scratch_shapes=[pltpu.VMEM((c, lout + 2 * pad), jnp.float32)],
        ),
        compiler_params=pltpu.CompilerParams(
            # batch chunks are independent -> parallel (2 TCs on v7x);
            # the time axis carries the recurrence -> arbitrary.
            dimension_semantics=("parallel", "arbitrary")),
    )(rzn_i, wh2, bh2, mask)


# ---------------------------------------------------------------------------
# Helpers.
# ---------------------------------------------------------------------------
def _clamp_time_block(tb, lout, c_out, c_in, act_bytes,
                      budget_bytes=10 * 1024 * 1024):
    """Shrink the time block until the double-buffered per-grid-step blocks of
    both kernels comfortably fit the scoped VMEM budget on all chips."""
    def est(tb_):
        # rzn_i block (f32) + recurrence out block + i2h in/out blocks,
        # all double-buffered by the BlockSpec pipeline.
        per_t = lout * (3 * c_out * 4 + c_out * act_bytes
                        + c_in * act_bytes + 3 * c_out * 4)
        return 2 * tb_ * per_t
    while tb > 1 and est(tb) > budget_bytes:
        tb //= 2
    return max(tb, 1)


# ---------------------------------------------------------------------------
# Public wrapper: stacked Conv1dGRU forward.
# ---------------------------------------------------------------------------
def conv1d_gru_forward(input_tensor, params, *, time_block=8, batch_chunks=1,
                       matmul_dtype=None):
    """input_tensor: (T, N, C_in, W); params: list of (w_i, b_i, w_h, b_h) with
    torch Conv1d shapes w_* = (3*C_out, C_prev, K), b_* = (3*C_out,).
    Returns (T, N, C_out, W)."""
    t_len, n_batch, c_in0, width = input_tensor.shape
    k_size = params[0][0].shape[-1]
    assert k_size % 2 == 1, "even kernel_size changes output width in torch"
    pad = k_size // 2
    wp = width + 2 * pad
    assert n_batch % batch_chunks == 0
    nc = n_batch // batch_chunks
    lc = nc * wp                      # padded-flattened length per batch chunk
    lout = lc - 2 * pad               # conv-output columns per chunk

    mm_dtype = jnp.float32 if matmul_dtype is None else matmul_dtype
    act_dtype = jnp.float32 if matmul_dtype is None else matmul_dtype
    act_bytes = jnp.dtype(act_dtype).itemsize

    c_out_max = max(p[0].shape[0] // 3 for p in params)
    tb = min(time_block, t_len)
    tb = _clamp_time_block(tb, lout, c_out_max, max(c_in0, c_out_max),
                           act_bytes)

    # --- layout plumbing (XLA glue): (T,N,C,W) -> lane-dense flat (nb,T,C,Lout)
    # valid data lives at flat column n*Wp + w; inter-sample columns are zero,
    # which doubles as the conv zero-padding between batch samples.
    x = input_tensor.reshape(t_len, batch_chunks, nc, -1, width)
    x = jnp.transpose(x, (1, 0, 3, 2, 4))               # (nb, T, C, Nc, W)
    x = jnp.pad(x, ((0, 0),) * 4 + ((0, 2 * pad),))     # (nb, T, C, Nc, Wp)
    x = x.reshape(batch_chunks, t_len, -1, lc)[..., :lout].astype(act_dtype)

    # pad time to a multiple of the time block (extra steps are causal: they
    # run after the real steps of each chunk and are sliced off afterwards)
    t_pad = pl.cdiv(t_len, tb) * tb
    if t_pad != t_len:
        x = jnp.pad(x, ((0, 0), (0, t_pad - t_len), (0, 0), (0, 0)))

    # valid-column mask (keeps inter-sample padding columns exactly zero)
    col = jnp.arange(lout)
    mask = ((col % wp) < width).astype(jnp.float32).reshape(1, lout)

    for (w_i, b_i, w_h, b_h) in params:
        c3 = w_i.shape[0]
        assert w_i.shape[-1] == k_size and w_h.shape[-1] == k_size
        # (3C, Cprev, K) -> (3C, K*Cprev) matching the im2col row order [k, c]
        wi2 = jnp.transpose(w_i, (0, 2, 1)).reshape(c3, k_size * w_i.shape[1])
        wh2 = jnp.transpose(w_h, (0, 2, 1)).reshape(c3, k_size * w_h.shape[1])
        wi2 = wi2.astype(mm_dtype)
        wh2 = wh2.astype(mm_dtype)
        bi2 = b_i.reshape(c3, 1).astype(jnp.float32)
        bh2 = b_h.reshape(c3, 1).astype(jnp.float32)

        # 1) hoisted, batch/time-parallel input->hidden conv (off serial path)
        rzn_i = _i2h_conv(x, wi2, bi2, pad=pad, time_block=tb)
        # 2) serialized recurrence: h2h conv + gates only
        x = _gru_recurrence(rzn_i, wh2, bh2, mask, pad=pad, time_block=tb,
                            out_dtype=act_dtype)

    # --- layout plumbing back: (nb, T, C, Lout) -> (T, N, C, W)
    y = x[:, :t_len]
    c_out = y.shape[2]
    y = jnp.pad(y, ((0, 0), (0, 0), (0, 0), (0, 2 * pad)))   # (nb, T, C, Lc)
    y = y.reshape(batch_chunks, t_len, c_out, nc, wp)[..., :width]
    y = jnp.transpose(y, (1, 0, 3, 2, 4)).reshape(t_len, n_batch, c_out, width)
    return y.astype(input_tensor.dtype)


# ---------------------------------------------------------------------------
# Pure-JAX reference (mirrors the PyTorch forward) for a sanity check.
# ---------------------------------------------------------------------------
def _reference_forward(input_tensor, params):
    T, N, _, W = input_tensor.shape

    def conv1d(x, w, b):  # x: (N, C, W), w: (Cout, Cin, K) -- same as nn.Conv1d
        p = w.shape[-1] // 2
        y = jax.lax.conv_general_dilated(
            x, w, window_strides=(1,), padding=[(p, p)],
            dimension_numbers=("NCH", "OIH", "NCH"))
        return y + b[None, :, None]

    inputs = [input_tensor[t] for t in range(T)]
    outs = inputs
    for (wi, bi, wh, bh) in params:
        C = wi.shape[0] // 3
        h = jnp.zeros((N, C, W), jnp.float32)
        outs = []
        for t in range(T):
            rzn_i = conv1d(inputs[t], wi, bi)
            rzn_h = conv1d(h, wh, bh)
            ri, zi, ni = rzn_i[:, :C], rzn_i[:, C:2 * C], rzn_i[:, 2 * C:]
            rh, zh, nh = rzn_h[:, :C], rzn_h[:, C:2 * C], rzn_h[:, 2 * C:]
            n = jnp.tanh(ni + jax.nn.sigmoid(ri + rh) * nh)
            z = jax.nn.sigmoid(zi + zh)
            h = (1.0 - z) * n + z * h
            outs.append(h)
        inputs = outs
    return jnp.stack(outs, axis=0)


if __name__ == "__main__":
    # Small shapes: seq T=8, batch N=2, in_channels=4, out_channels=8,
    # width (dim_in) W=16, kernel_size=3, num_layers=2, bias=True.
    T, N, W = 8, 2, 16
    C_in, C_out, K, num_layers = 4, 8, 3, 2

    key = jax.random.PRNGKey(0)
    key, kx = jax.random.split(key)
    x = jax.random.normal(kx, (T, N, C_in, W), jnp.float32)

    params = []
    cin = C_in
    for _ in range(num_layers):
        key, k1, k2, k3, k4 = jax.random.split(key, 5)
        w_i = 0.3 * jax.random.normal(k1, (3 * C_out, cin, K), jnp.float32)
        b_i = 0.1 * jax.random.normal(k2, (3 * C_out,), jnp.float32)
        w_h = 0.3 * jax.random.normal(k3, (3 * C_out, C_out, K), jnp.float32)
        b_h = 0.1 * jax.random.normal(k4, (3 * C_out,), jnp.float32)
        params.append((w_i, b_i, w_h, b_h))
        cin = C_out

    ref = jax.block_until_ready(_reference_forward(x, params))

    # f32 path, time-blocked recurrence (2 time blocks of 4 steps).
    out = jax.block_until_ready(conv1d_gru_forward(x, params, time_block=4))
    assert out.shape == (T, N, C_out, W), out.shape
    err = float(jnp.max(jnp.abs(out - ref)))
    assert err < 5e-2, f"f32 path mismatch vs reference, max abs err = {err}"

    # bf16 matmul operands + 2 parallel batch chunks (v6e/v7x style config).
    out_bf16 = jax.block_until_ready(
        conv1d_gru_forward(x, params, time_block=8, batch_chunks=2,
                           matmul_dtype=jnp.bfloat16))
    err_bf16 = float(jnp.max(jnp.abs(out_bf16 - ref)))
    assert err_bf16 < 1e-1, f"bf16 path mismatch vs reference, err = {err_bf16}"

    print("KERNEL_OK")
</pallas_src>

<mosaic_0001>
module attributes {stable_mosaic.version = 11 : i64} {
  func.func @_i2h_conv_kernel(%arg0: i32, %arg1: i32, %arg2: memref<1x4x4x34xf32, #tpu.memory_space<vmem>>, %arg3: memref<24x12xf32, #tpu.memory_space<vmem>>, %arg4: memref<24x1xf32, #tpu.memory_space<vmem>>, %arg5: memref<1x4x24x34xf32, #tpu.memory_space<vmem>>) attributes {dimension_semantics = [#tpu.dimension_semantics<parallel>, #tpu.dimension_semantics<parallel>], iteration_bounds = array<i64: 1, 2>, scalar_prefetch = 0 : i64, scratch_operands = 0 : i64, tpu.core_type = #tpu.core_type<tc>, window_params = [{transform_indices = @transform_0, window_bounds = array<i64: 1, 4, 4, 34>}, {pipeline_mode = #tpu.pipeline_mode<synchronous>, transform_indices = @transform_1, window_bounds = array<i64: 24, 12>}, {pipeline_mode = #tpu.pipeline_mode<synchronous>, transform_indices = @transform_2, window_bounds = array<i64: 24, 1>}, {transform_indices = @transform_3, window_bounds = array<i64: 1, 4, 24, 34>}]} {
    %c0 = arith.constant 0 : index
    %c0_0 = arith.constant 0 : index
    %0 = vector.load %arg3[%c0, %c0_0] : memref<24x12xf32, #tpu.memory_space<vmem>>, vector<24x12xf32>
    %c0_1 = arith.constant 0 : index
    %c0_2 = arith.constant 0 : index
    %1 = vector.load %arg4[%c0_1, %c0_2] : memref<24x1xf32, #tpu.memory_space<vmem>>, vector<24x1xf32>
    %c0_3 = arith.constant 0 : index
    %c0_4 = arith.constant 0 : index
    %c0_5 = arith.constant 0 : index
    %c0_6 = arith.constant 0 : index
    %2 = vector.load %arg2[%c0_3, %c0_4, %c0_5, %c0_6] : memref<1x4x4x34xf32, #tpu.memory_space<vmem>>, vector<1x1x4x34xf32>
    %3 = vector.shape_cast %2 : vector<1x1x4x34xf32> to vector<4x34xf32>
    %cst = arith.constant 0.000000e+00 : f32
    %4 = vector.broadcast %cst : f32 to vector<4x1xf32>
    %5 = tpu.concatenate %4, %3, %4 in 1 : vector<4x1xf32>, vector<4x34xf32>, vector<4x1xf32> -> vector<4x36xf32>
    %6 = vector.extract_strided_slice %5 {offsets = [0, 0], sizes = [4, 34], strides = [1, 1]} : vector<4x36xf32> to vector<4x34xf32>
    %7 = vector.extract_strided_slice %5 {offsets = [0, 1], sizes = [4, 34], strides = [1, 1]} : vector<4x36xf32> to vector<4x34xf32>
    %8 = vector.extract_strided_slice %5 {offsets = [0, 2], sizes = [4, 34], strides = [1, 1]} : vector<4x36xf32> to vector<4x34xf32>
    %9 = tpu.concatenate %6, %7, %8 in 0 : vector<4x34xf32>, vector<4x34xf32>, vector<4x34xf32> -> vector<12x34xf32>
    %cst_7 = arith.constant dense<0.000000e+00> : vector<24x34xf32>
    %10 = tpu.matmul %0, %9, %cst_7 {dimension_numbers = #tpu.dot_dimension_numbers<[1], [0], [0], [1], [0, 0, 1, 1], [], []>} : vector<24x12xf32>, vector<12x34xf32>, vector<24x34xf32> -> vector<24x34xf32>
    %11 = vector.broadcast %1 : vector<24x1xf32> to vector<24x34xf32>
    %12 = arith.addf %10, %11 : vector<24x34xf32>
    %c0_8 = arith.constant 0 : index
    %c0_9 = arith.constant 0 : index
    %c0_10 = arith.constant 0 : index
    %c0_11 = arith.constant 0 : index
    %13 = vector.load %arg5[%c0_8, %c0_9, %c0_10, %c0_11] : memref<1x4x24x34xf32, #tpu.memory_space<vmem>>, vector<1x1x24x34xf32>
    %14 = vector.shape_cast %13 : vector<1x1x24x34xf32> to vector<24x34xf32>
    %15 = vector.shape_cast %12 : vector<24x34xf32> to vector<1x1x24x34xf32>
    tpu.vector_store %arg5[%c0_8, %c0_9, %c0_10, %c0_11], %15 {strides = array<i32>} : memref<1x4x24x34xf32, #tpu.memory_space<vmem>>, vector<1x1x24x34xf32>,
    %c0_12 = arith.constant 0 : index
    %c1 = arith.constant 1 : index
    %c0_13 = arith.constant 0 : index
    %c0_14 = arith.constant 0 : index
    %16 = vector.load %arg2[%c0_12, %c1, %c0_13, %c0_14] : memref<1x4x4x34xf32, #tpu.memory_space<vmem>>, vector<1x1x4x34xf32>
    %17 = vector.shape_cast %16 : vector<1x1x4x34xf32> to vector<4x34xf32>
    %cst_15 = arith.constant 0.000000e+00 : f32
    %18 = vector.broadcast %cst_15 : f32 to vector<4x1xf32>
    %19 = tpu.concatenate %18, %17, %18 in 1 : vector<4x1xf32>, vector<4x34xf32>, vector<4x1xf32> -> vector<4x36xf32>
    %20 = vector.extract_strided_slice %19 {offsets = [0, 0], sizes = [4, 34], strides = [1, 1]} : vector<4x36xf32> to vector<4x34xf32>
    %21 = vector.extract_strided_slice %19 {offsets = [0, 1], sizes = [4, 34], strides = [1, 1]} : vector<4x36xf32> to vector<4x34xf32>
    %22 = vector.extract_strided_slice %19 {offsets = [0, 2], sizes = [4, 34], strides = [1, 1]} : vector<4x36xf32> to vector<4x34xf32>
    %23 = tpu.concatenate %20, %21, %22 in 0 : vector<4x34xf32>, vector<4x34xf32>, vector<4x34xf32> -> vector<12x34xf32>
    %cst_16 = arith.constant dense<0.000000e+00> : vector<24x34xf32>
    %24 = tpu.matmul %0, %23, %cst_16 {dimension_numbers = #tpu.dot_dimension_numbers<[1], [0], [0], [1], [0, 0, 1, 1], [], []>} : vector<24x12xf32>, vector<12x34xf32>, vector<24x34xf32> -> vector<24x34xf32>
    %25 = vector.broadcast %1 : vector<24x1xf32> to vector<24x34xf32>
    %26 = arith.addf %24, %25 : vector<24x34xf32>
    %c0_17 = arith.constant 0 : index
    %c1_18 = arith.constant 1 : index
    %c0_19 = arith.constant 0 : index
    %c0_20 = arith.constant 0 : index
    %27 = vector.load %arg5[%c0_17, %c1_18, %c0_19, %c0_20] : memref<1x4x24x34xf32, #tpu.memory_space<vmem>>, vector<1x1x24x34xf32>
    %28 = vector.shape_cast %27 : vector<1x1x24x34xf32> to vector<24x34xf32>
    %29 = vector.shape_cast %26 : vector<24x34xf32> to vector<1x1x24x34xf32>
    tpu.vector_store %arg5[%c0_17, %c1_18, %c0_19, %c0_20], %29 {strides = array<i32>} : memref<1x4x24x34xf32, #tpu.memory_space<vmem>>, vector<1x1x24x34xf32>,
    %c0_21 = arith.constant 0 : index
    %c2 = arith.constant 2 : index
    %c0_22 = arith.constant 0 : index
    %c0_23 = arith.constant 0 : index
    %30 = vector.load %arg2[%c0_21, %c2, %c0_22, %c0_23] : memref<1x4x4x34xf32, #tpu.memory_space<vmem>>, vector<1x1x4x34xf32>
    %31 = vector.shape_cast %30 : vector<1x1x4x34xf32> to vector<4x34xf32>
    %cst_24 = arith.constant 0.000000e+00 : f32
    %32 = vector.broadcast %cst_24 : f32 to vector<4x1xf32>
    %33 = tpu.concatenate %32, %31, %32 in 1 : vector<4x1xf32>, vector<4x34xf32>, vector<4x1xf32> -> vector<4x36xf32>
    %34 = vector.extract_strided_slice %33 {offsets = [0, 0], sizes = [4, 34], strides = [1, 1]} : vector<4x36xf32> to vector<4x34xf32>
    %35 = vector.extract_strided_slice %33 {offsets = [0, 1], sizes = [4, 34], strides = [1, 1]} : vector<4x36xf32> to vector<4x34xf32>
    %36 = vector.extract_strided_slice %33 {offsets = [0, 2], sizes = [4, 34], strides = [1, 1]} : vector<4x36xf32> to vector<4x34xf32>
    %37 = tpu.concatenate %34, %35, %36 in 0 : vector<4x34xf32>, vector<4x34xf32>, vector<4x34xf32> -> vector<12x34xf32>
    %cst_25 = arith.constant dense<0.000000e+00> : vector<24x34xf32>
    %38 = tpu.matmul %0, %37, %cst_25 {dimension_numbers = #tpu.dot_dimension_numbers<[1], [0], [0], [1], [0, 0, 1, 1], [], []>} : vector<24x12xf32>, vector<12x34xf32>, vector<24x34xf32> -> vector<24x34xf32>
    %39 = vector.broadcast %1 : vector<24x1xf32> to vector<24x34xf32>
    %40 = arith.addf %38, %39 : vector<24x34xf32>
    %c0_26 = arith.constant 0 : index
    %c2_27 = arith.constant 2 : index
    %c0_28 = arith.constant 0 : index
    %c0_29 = arith.constant 0 : index
    %41 = vector.load %arg5[%c0_26, %c2_27, %c0_28, %c0_29] : memref<1x4x24x34xf32, #tpu.memory_space<vmem>>, vector<1x1x24x34xf32>
    %42 = vector.shape_cast %41 : vector<1x1x24x34xf32> to vector<24x34xf32>
    %43 = vector.shape_cast %40 : vector<24x34xf32> to vector<1x1x24x34xf32>
    tpu.vector_store %arg5[%c0_26, %c2_27, %c0_28, %c0_29], %43 {strides = array<i32>} : memref<1x4x24x34xf32, #tpu.memory_space<vmem>>, vector<1x1x24x34xf32>,
    %c0_30 = arith.constant 0 : index
    %c3 = arith.constant 3 : index
    %c0_31 = arith.constant 0 : index
    %c0_32 = arith.constant 0 : index
    %44 = vector.load %arg2[%c0_30, %c3, %c0_31, %c0_32] : memref<1x4x4x34xf32, #tpu.memory_space<vmem>>, vector<1x1x4x34xf32>
    %45 = vector.shape_cast %44 : vector<1x1x4x34xf32> to vector<4x34xf32>
    %cst_33 = arith.constant 0.000000e+00 : f32
    %46 = vector.broadcast %cst_33 : f32 to vector<4x1xf32>
    %47 = tpu.concatenate %46, %45, %46 in 1 : vector<4x1xf32>, vector<4x34xf32>, vector<4x1xf32> -> vector<4x36xf32>
    %48 = vector.extract_strided_slice %47 {offsets = [0, 0], sizes = [4, 34], strides = [1, 1]} : vector<4x36xf32> to vector<4x34xf32>
    %49 = vector.extract_strided_slice %47 {offsets = [0, 1], sizes = [4, 34], strides = [1, 1]} : vector<4x36xf32> to vector<4x34xf32>
    %50 = vector.extract_strided_slice %47 {offsets = [0, 2], sizes = [4, 34], strides = [1, 1]} : vector<4x36xf32> to vector<4x34xf32>
    %51 = tpu.concatenate %48, %49, %50 in 0 : vector<4x34xf32>, vector<4x34xf32>, vector<4x34xf32> -> vector<12x34xf32>
    %cst_34 = arith.constant dense<0.000000e+00> : vector<24x34xf32>
    %52 = tpu.matmul %0, %51, %cst_34 {dimension_numbers = #tpu.dot_dimension_numbers<[1], [0], [0], [1], [0, 0, 1, 1], [], []>} : vector<24x12xf32>, vector<12x34xf32>, vector<24x34xf32> -> vector<24x34xf32>
    %53 = vector.broadcast %1 : vector<24x1xf32> to vector<24x34xf32>
    %54 = arith.addf %52, %53 : vector<24x34xf32>
    %c0_35 = arith.constant 0 : index
    %c3_36 = arith.constant 3 : index
    %c0_37 = arith.constant 0 : index
    %c0_38 = arith.constant 0 : index
    %55 = vector.load %arg5[%c0_35, %c3_36, %c0_37, %c0_38] : memref<1x4x24x34xf32, #tpu.memory_space<vmem>>, vector<1x1x24x34xf32>
    %56 = vector.shape_cast %55 : vector<1x1x24x34xf32> to vector<24x34xf32>
    %57 = vector.shape_cast %54 : vector<24x34xf32> to vector<1x1x24x34xf32>
    tpu.vector_store %arg5[%c0_35, %c3_36, %c0_37, %c0_38], %57 {strides = array<i32>} : memref<1x4x24x34xf32, #tpu.memory_space<vmem>>, vector<1x1x24x34xf32>,
    return
  }
  func.func @transform_0(%arg0: i32, %arg1: i32) -> (i32, i32, i32, i32) {
    %c0_i32 = arith.constant 0 : i32
    %c0_i32_0 = arith.constant 0 : i32
    %c0_i32_1 = arith.constant 0 : i32
    return %arg0, %arg1, %c0_i32, %c0_i32_0 : i32, i32, i32, i32
  }
  func.func @transform_1(%arg0: i32, %arg1: i32) -> (i32, i32) {
    %c0_i32 = arith.constant 0 : i32
    %c0_i32_0 = arith.constant 0 : i32
    %c0_i32_1 = arith.constant 0 : i32
    return %c0_i32, %c0_i32_0 : i32, i32
  }
  func.func @transform_2(%arg0: i32, %arg1: i32) -> (i32, i32) {
    %c0_i32 = arith.constant 0 : i32
    %c0_i32_0 = arith.constant 0 : i32
    %c0_i32_1 = arith.constant 0 : i32
    return %c0_i32, %c0_i32_0 : i32, i32
  }
  func.func @transform_3(%arg0: i32, %arg1: i32) -> (i32, i32, i32, i32) {
    %c0_i32 = arith.constant 0 : i32
    %c0_i32_0 = arith.constant 0 : i32
    %c0_i32_1 = arith.constant 0 : i32
    return %arg0, %arg1, %c0_i32, %c0_i32_0 : i32, i32, i32, i32
  }
}

</mosaic_0001>

<llo_original>
// kernel: tpu_custom_call.1
$region0: #{tpu_custom_call.1}
  #allocation0 [shape = 'u32[]', space=smem, size = 0x4, offset = 0x4, fixed_abs, tag = 'smem constant byte address 0x4 - core index']
  #allocation1 [shape = 'u32[72,128]{1,0:T(1,128)}', space=vmem, size = 0x9000, scoped, tag = 'internal scratch']
  %s0 = inlined_call_operand.vmem [shape: f32[1,8,4,34], index: 0, kind: input, shape index: {}]
  %s1 = inlined_call_operand.vmem [shape: f32[24,12], index: 1, kind: input, shape index: {}]
  %s2 = inlined_call_operand.vmem [shape: f32[24,1], index: 2, kind: input, shape index: {}]
  %s3 = inlined_call_operand.hbm [shape: f32[1,8,24,34], index: 3, kind: output, shape index: {}]
  %s4 = sld [smem:[#allocation0]]
  $region45: #{tpu_custom_call.1} parent=0
    _
  %s6 = ssub.s32 1, %s4
  %s7 = scalar_select 0, %s6, %s4
  $region1: #{tpu_custom_call.1} parent=0
    #allocation2 [shape = 'u8[98304]{0}', space=vmem, size = 0x18000, scoped, tag = 'output window, operand 0']
    #allocation3 [shape = 's32[2]{0}', space=sflag, size = 0x8, scoped, tag = 'scoped memory for tpu_custom_call.1']
    %8 = vsyncpa [#allocation3], 0
    %s9 = scalar_lea.sflag [#allocation3], 1
    %10 = vsyncpa %s9, 0
    loop: start=0, step=1, limit=4
    $region2: #{tpu_custom_call.1} parent=1 // loop_pre_header
      _
    $region3: #{tpu_custom_call.1} parent=1 // loop_header
      %s12 = sphi 0, %s16
      %p13 = scmp.ge.s32.totalorder %s12, 4
      %s19 = sphi 0, %s31
      %s20 = sphi 0, %s27
      %s21 = sphi 0, %s19
      %s22 = sphi 0, %s20
      %s23 = sphi 0, %s21
      %s24 = sphi 0, %s22
      %s36 = sphi 0, %s38
      %s39 = sphi 0, %s36
      %s40 = sphi 0, %s39
      %s56 = sphi 0, %s40
      %s60 = sphi 0, %s60
      %s62 = sphi 0, %s60
      %s63 = sphi 0, %s62
      %s77 = sphi 0, %s63
      %s81 = sphi 0, %s81
      %s83 = sphi 0, %s81
      %s84 = sphi 0, %s83
      %s98 = sphi 0, %s84
      %s106 = sphi 0, %s108
      %s109 = sphi 0, %s106
      %s110 = sphi 0, %s109
      %s126 = sphi 0, %s110
    $region4: #{tpu_custom_call.1} parent=1 // loop_header_branch
      %15 = sbr.rel (%p13) target = $region8
    $region5: #{tpu_custom_call.1} parent=1 // loop_body
      %s17 = ssub.s32 %s12, 1
      %s18 = ssub.s32 %s12, 2
      %s25 = sadd.s32 1, %s20
      %p26 = scmp.ge.s32.totalorder %s25, 2
      %s27 = scalar_select %p26, 0, %s25
      %s28 = sadd.s32 1, %s19
      %s29 = scalar_select %p26, %s28, %s19
      %p30 = scmp.ge.s32.totalorder %s29, 1
      %s31 = scalar_select %p30, 0, %s29
      %s32 = ssub.s32 %s19, %s31
      %s33 = ssub.s32 %s20, %s27
      %s34 = sor.u32 %s32, %s33
      %p35 = scmp.eq.s32.totalorder %s34, 0
      %s37 = sadd.s32 %s36, 1
      %s38 = scalar_select %p35, %s36, %s37
      %p41 = pneg %p35
      %p42 = scmp.eq.s32.totalorder %s12, 1
      %p43 = por %p41, %p42
      %p44 = scmp.ne.s32.totalorder %s36, %s39
      %p45 = scmp.eq.s32.totalorder %s12, 0
      %p46 = por %p44, %p45
      %p47 = scmp.ne.s32.totalorder %s36, %s39
      %p48 = scmp.eq.s32.totalorder %s17, 1
      %p49 = por %p47, %p48
      %p50 = scmp.ne.s32.totalorder %s39, %s40
      %p51 = scmp.eq.s32.totalorder %s17, 0
      %p52 = por %p50, %p51
      %p53 = scmp.ne.s32.totalorder %s39, %s40
      %p54 = scmp.eq.s32.totalorder %s18, 1
      %p55 = por %p53, %p54
      %p57 = scmp.ne.s32.totalorder %s40, %s56
      %p58 = scmp.eq.s32.totalorder %s18, 0
      %p59 = por %p57, %p58
      %s61 = sadd.s32 %s60, 1
      %p64 = scmp.eq.s32.totalorder %s12, 1
      %p65 = scmp.ne.s32.totalorder %s60, %s62
      %p66 = scmp.eq.s32.totalorder %s12, 0
      %p67 = por %p65, %p66
      %p68 = scmp.ne.s32.totalorder %s60, %s62
      %p69 = scmp.eq.s32.totalorder %s17, 1
      %p70 = por %p68, %p69
      %p71 = scmp.ne.s32.totalorder %s62, %s63
      %p72 = scmp.eq.s32.totalorder %s17, 0
      %p73 = por %p71, %p72
      %p74 = scmp.ne.s32.totalorder %s62, %s63
      %p75 = scmp.eq.s32.totalorder %s18, 1
      %p76 = por %p74, %p75
      %p78 = scmp.ne.s32.totalorder %s63, %s77
      %p79 = scmp.eq.s32.totalorder %s18, 0
      %p80 = por %p78, %p79
      %s82 = sadd.s32 %s81, 1
      %p85 = scmp.eq.s32.totalorder %s12, 1
      %p86 = scmp.ne.s32.totalorder %s81, %s83
      %p87 = scmp.eq.s32.totalorder %s12, 0
      %p88 = por %p86, %p87
      %p89 = scmp.ne.s32.totalorder %s81, %s83
      %p90 = scmp.eq.s32.totalorder %s17, 1
      %p91 = por %p89, %p90
      %p92 = scmp.ne.s32.totalorder %s83, %s84
      %p93 = scmp.eq.s32.totalorder %s17, 0
      %p94 = por %p92, %p93
      %p95 = scmp.ne.s32.totalorder %s83, %s84
      %p96 = scmp.eq.s32.totalorder %s18, 1
      %p97 = por %p95, %p96
      %p99 = scmp.ne.s32.totalorder %s84, %s98
      %p100 = scmp.eq.s32.totalorder %s18, 0
      %p101 = por %p99, %p100
      %s102 = ssub.s32 %s19, %s31
      %s103 = ssub.s32 %s20, %s27
      %s104 = sor.u32 %s102, %s103
      %p105 = scmp.eq.s32.totalorder %s104, 0
      %s107 = sadd.s32 %s106, 1
      %s108 = scalar_select %p105, %s106, %s107
      %p111 = pneg %p105
      %p112 = scmp.eq.s32.totalorder %s12, 1
      %p113 = por %p111, %p112
      %p114 = scmp.ne.s32.totalorder %s106, %s109
      %p115 = scmp.eq.s32.totalorder %s12, 0
      %p116 = por %p114, %p115
      %p117 = scmp.ne.s32.totalorder %s106, %s109
      %p118 = scmp.eq.s32.totalorder %s17, 1
      %p119 = por %p117, %p118
      %p120 = scmp.ne.s32.totalorder %s109, %s110
      %p121 = scmp.eq.s32.totalorder %s17, 0
      %p122 = por %p120, %p121
      %p123 = scmp.ne.s32.totalorder %s109, %s110
      %p124 = scmp.eq.s32.totalorder %s18, 1
      %p125 = por %p123, %p124
      %p127 = scmp.ne.s32.totalorder %s110, %s126
      %p128 = scmp.eq.s32.totalorder %s18, 0
      %p129 = por %p127, %p128
      %p130 = scmp.le.s32.totalorder 1, %s12
      %p131 = scmp.lt.s32.totalorder %s12, 3
      %p132 = pnand %p130, %p131
      %p133 = pneg %p132
      // Predicated region
      $region9: #{tpu_custom_call.1} parent=5 // pred_check
        _
      $region10: #{tpu_custom_call.1} parent=5 // pred_check_branch
        %135 = sbr.rel (%p132) target = $region12
      $region11: #{tpu_custom_call.1} parent=5 // pred_region
        %s136 = ssub.s32 %s12, 1
        // Predicated region
        $region13: #{tpu_custom_call.1} parent=11 // pred_check
          %p137 = pneg %p73
        $region14: #{tpu_custom_call.1} parent=11 // pred_check_branch
          %139 = sbr.rel (%p137) target = $region16
        $region15: #{tpu_custom_call.1} parent=11 // pred_region
          _
        $region16: #{tpu_custom_call.1} parent=11 // pred_fallthru
          _
        // Predicated region
        $region17: #{tpu_custom_call.1} parent=11 // pred_check
          %p140 = pneg %p94
        $region18: #{tpu_custom_call.1} parent=11 // pred_check_branch
          %142 = sbr.rel (%p140) target = $region20
        $region19: #{tpu_custom_call.1} parent=11 // pred_region
          _
        $region20: #{tpu_custom_call.1} parent=11 // pred_fallthru
          _
      $region12: #{tpu_custom_call.1} parent=5 // pred_fallthru
        _
      %p143 = scmp.lt.s32.totalorder %s12, 2
      // Predicated region
      $region21: #{tpu_custom_call.1} parent=5 // pred_check
        %p144 = pneg %p143
      $region22: #{tpu_custom_call.1} parent=5 // pred_check_branch
        %146 = sbr.rel (%p144) target = $region24
      $region23: #{tpu_custom_call.1} parent=5 // pred_region
        // Predicated region
        $region25: #{tpu_custom_call.1} parent=23 // pred_check
          %p147 = pneg %p46
        $region26: #{tpu_custom_call.1} parent=23 // pred_check_branch
          %149 = sbr.rel (%p147) target = $region28
        $region27: #{tpu_custom_call.1} parent=23 // pred_region
          %s150 = smul.u32 4, %s20
          %p151 = scmp.lt.s32.totalorder %s19, 0
          %s152 = scalar_select %p151, %s19, 0
          %p153 = scmp.lt.s32.totalorder %s150, 7
          %s154 = scalar_select %p153, %s150, 7
          %s155 = smul.addr %s152, 8
          %s156 = sadd.s32 %s154, %s155
          %s157 = smul.addr %s156, 4
          %s158 = scalar_lea.vmem %s0, %s157
          %s159 = smul.u32 4, %s20
        $region28: #{tpu_custom_call.1} parent=23 // pred_fallthru
          _
      $region24: #{tpu_custom_call.1} parent=5 // pred_fallthru
        _
      %p160 = scmp.le.s32.totalorder 1, %s12
      %p161 = scmp.lt.s32.totalorder %s12, 3
      %p162 = pnand %p160, %p161
      %p163 = pneg %p162
      // Predicated region
      $region29: #{tpu_custom_call.1} parent=5 // pred_check
        _
      $region30: #{tpu_custom_call.1} parent=5 // pred_check_branch
        %165 = sbr.rel (%p162) target = $region32
      $region31: #{tpu_custom_call.1} parent=5 // pred_region
        %s166 = ssub.s32 %s12, 1
        %s167 = smul.u32 4, %s22
        %p168 = scmp.lt.s32.totalorder %s21, 0
        %s169 = scalar_select %p168, %s21, 0
        %p170 = scmp.lt.s32.totalorder %s167, 7
        %s171 = scalar_select %p170, %s167, 7
        %s172 = smul.addr %s169, 8
        %s173 = sadd.s32 %s171, %s172
        %s174 = smul.addr %s173, 4
        %s175 = scalar_lea.vmem %s0, %s174
        %p176 = pneg %p52
        %p177 = pneg %p49
        %p178 = pneg %p73
        %p179 = pneg %p70
        %p180 = pneg %p94
        %p181 = pneg %p91
        %p182 = pneg %p122
        %p183 = pneg %p119
        %s184 = sand.u32 %s109, 1
        %s185 = scalar_lea.sflag [#allocation3], %s184
        %s186 = sand.u32 %s109, 1
        %s187 = smul.addr %s186, 96
        %s188 = scalar_lea.vmem [#allocation2], %s187
        %s189 = smul.u32 4, %s22
        %p190 = scmp.lt.s32.totalorder %s21, 0
        %s191 = scalar_select %p190, %s21, 0
        %p192 = scmp.lt.s32.totalorder %s189, 7
        %s193 = scalar_select %p192, %s189, 7
        %s194 = smul.addr %s191, 8
        %s195 = sadd.s32 %s193, %s194
        %s196 = smul.addr %s195, 4
        %s197 = scalar_lea.vmem %s0, %s196
        %s198 = smul.u32 4, %s22
        %s199 = smul.u32 4, %s22
        %v200 = vld [vmem:[%s1] sm:$0xff]
        %v201 = vld [vmem:[%s1 + $0x8] sm:$0xff]
        %v202 = vld [vmem:[%s1 + $0x10] sm:$0xff]
        %v203 = vld [vmem:[%s2] sm:$0xff]
        %v204 = vld [vmem:[%s2 + $0x8] sm:$0xff]
        %v205 = vld [vmem:[%s2 + $0x10] sm:$0xff]
        %v206 = vld [vmem:[%s197] sm:$0xf]
        %208 = vrot.lane.b32.xlu0 %v206, 1
        %v209 = vpop.permute.xlu0 %208
        %vm211 = vcmask 7168
        %v212 = vsel %vm211, 0.0, %v209
        %vm213 = vcmask 285696
        %v214 = vsel %vm213, %v212, 0.0
        %v216 = vrot.slane %v214, 4
        %217 = vrot.lane.b32.xlu0 %v216, 127
        %v218 = vpop.permute.xlu0 %217
        %220 = vrot.lane.b32.xlu0 %v214, 126
        %v221 = vpop.permute.xlu0 %220
        %vm222 = vcmask 1043456
        %v223 = vsel %vm222, %v214, %v218
        %225 = vset.pattern.permute.xlu0 0
        %226 = vperm.xlu0 %225, %v203
        %v227 = vpop.permute.xlu0 %226
        %230 = vset.pattern.permute.xlu0 0
        %231 = vperm.xlu0 %230, %v204
        %v232 = vpop.permute.xlu0 %231
        %235 = vset.pattern.permute.xlu0 0
        %236 = vperm.xlu0 %235, %v205
        %v237 = vpop.permute.xlu0 %236
        %vm239 = vcmask 97280
        %v241 = vsel %vm239, %v200, 0
        %v244 = vsel %vm239, %v201, 0
        %v247 = vsel %vm239, %v202, 0
        %v249 = vsel %vm222, %v221, 0
        %251 = vmatpush.msra.mxu0 0.0
        %252 = vmatpush.msra.mxu0 0.0
        %253 = vmatpush.msra.mxu0 0.0
        %254 = vmatpush.msra.mxu0 0.0
        %255 = vmatpush.msra.mxu0 0.0
        %256 = vmatpush.msra.mxu0 0.0
        %257 = vmatpush.msra.mxu0 0.0
        %258 = vmatpush.msra.mxu0 0.0
        %259 = vmatpush.msra.mxu0 0.0
        %260 = vmatpush.msra.mxu0 0.0
        %261 = vmatpush.msra.mxu0 0.0
        %262 = vmatpush.msra.mxu0 0.0
        %263 = vmatpush.msra.mxu0 0.0
        %264 = vmatpush.msra.mxu0 0.0
        %265 = vmatpush.msra.mxu0 %v249
        %266 = vmatpush.msra.mxu0 %v223
        %267 = vmatmul.f32.gmra.mxu0 %v241
        %v268 = vpop.f32.mrf.mxu0
        %v269 = vadd.f32 %v227, %v268
        %270 = vmatmul.f32.gmra.mxu0 %v244
        %v271 = vpop.f32.mrf.mxu0
        %v272 = vadd.f32 %v232, %v271
        %273 = vmatmul.f32.gmra.mxu0 %v247
        %v274 = vpop.f32.mrf.mxu0
        %v275 = vadd.f32 %v237, %v274
        %276 = vdwg.mxu0
        %vm277 = vcmask 277504
        %278 = vst.msk [vmem:[%s188] sm:$0xff] %vm277, %v269
        %279 = vst.msk [vmem:[%s188 + $0x8] sm:$0xff] %vm277, %v272
        %280 = vst.msk [vmem:[%s188 + $0x10] sm:$0xff] %vm277, %v275
        %s281 = scalar_lea.vmem %s197, 4
        %v282 = vld [vmem:[%s281] sm:$0xf]
        %284 = vrot.lane.b32.xlu0 %v282, 1
        %v285 = vpop.permute.xlu0 %284
        %v287 = vsel %vm211, 0.0, %v285
        %v288 = vsel %vm213, %v287, 0.0
        %v290 = vrot.slane %v288, 4
        %291 = vrot.lane.b32.xlu0 %v290, 127
        %v292 = vpop.permute.xlu0 %291
        %294 = vrot.lane.b32.xlu0 %v288, 126
        %v295 = vpop.permute.xlu0 %294
        %v296 = vsel %vm222, %v288, %v292
        %v297 = vsel %vm222, %v295, 0
        %299 = vmatpush.msra.mxu0 0.0
        %300 = vmatpush.msra.mxu0 0.0
        %301 = vmatpush.msra.mxu0 0.0
        %302 = vmatpush.msra.mxu0 0.0
        %303 = vmatpush.msra.mxu0 0.0
        %304 = vmatpush.msra.mxu0 0.0
        %305 = vmatpush.msra.mxu0 0.0
        %306 = vmatpush.msra.mxu0 0.0
        %307 = vmatpush.msra.mxu0 0.0
        %308 = vmatpush.msra.mxu0 0.0
        %309 = vmatpush.msra.mxu0 0.0
        %310 = vmatpush.msra.mxu0 0.0
        %311 = vmatpush.msra.mxu0 0.0
        %312 = vmatpush.msra.mxu0 0.0
        %313 = vmatpush.msra.mxu0 %v297
        %314 = vmatpush.msra.mxu0 %v296
        %315 = vmatmul.f32.gmra.mxu0 %v241
        %v316 = vpop.f32.mrf.mxu0
        %v317 = vadd.f32 %v227, %v316
        %318 = vmatmul.f32.gmra.mxu0 %v244
        %v319 = vpop.f32.mrf.mxu0
        %v320 = vadd.f32 %v232, %v319
        %321 = vmatmul.f32.gmra.mxu0 %v247
        %v322 = vpop.f32.mrf.mxu0
        %v323 = vadd.f32 %v237, %v322
        %324 = vdwg.mxu0
        %s325 = scalar_lea.vmem %s188, 24 [#allocation2]
        %326 = vst.msk [vmem:[%s325] sm:$0xff] %vm277, %v317
        %327 = vst.msk [vmem:[%s325 + $0x8] sm:$0xff] %vm277, %v320
        %328 = vst.msk [vmem:[%s325 + $0x10] sm:$0xff] %vm277, %v323
        %s329 = scalar_lea.vmem %s197, 8
        %v330 = vld [vmem:[%s329] sm:$0xf]
        %332 = vrot.lane.b32.xlu0 %v330, 1
        %v333 = vpop.permute.xlu0 %332
        %v335 = vsel %vm211, 0.0, %v333
        %v336 = vsel %vm213, %v335, 0.0
        %v338 = vrot.slane %v336, 4
        %339 = vrot.lane.b32.xlu0 %v338, 127
        %v340 = vpop.permute.xlu0 %339
        %342 = vrot.lane.b32.xlu0 %v336, 126
        %v343 = vpop.permute.xlu0 %342
        %v344 = vsel %vm222, %v336, %v340
        %v345 = vsel %vm222, %v343, 0
        %347 = vmatpush.msra.mxu0 0.0
        %348 = vmatpush.msra.mxu0 0.0
        %349 = vmatpush.msra.mxu0 0.0
        %350 = vmatpush.msra.mxu0 0.0
        %351 = vmatpush.msra.mxu0 0.0
        %352 = vmatpush.msra.mxu0 0.0
        %353 = vmatpush.msra.mxu0 0.0
        %354 = vmatpush.msra.mxu0 0.0
        %355 = vmatpush.msra.mxu0 0.0
        %356 = vmatpush.msra.mxu0 0.0
        %357 = vmatpush.msra.mxu0 0.0
        %358 = vmatpush.msra.mxu0 0.0
        %359 = vmatpush.msra.mxu0 0.0
        %360 = vmatpush.msra.mxu0 0.0
        %361 = vmatpush.msra.mxu0 %v345
        %362 = vmatpush.msra.mxu0 %v344
        %363 = vmatmul.f32.gmra.mxu0 %v241
        %v364 = vpop.f32.mrf.mxu0
        %v365 = vadd.f32 %v227, %v364
        %366 = vmatmul.f32.gmra.mxu0 %v244
        %v367 = vpop.f32.mrf.mxu0
        %v368 = vadd.f32 %v232, %v367
        %369 = vmatmul.f32.gmra.mxu0 %v247
        %v370 = vpop.f32.mrf.mxu0
        %v371 = vadd.f32 %v237, %v370
        %372 = vdwg.mxu0
        %s373 = scalar_lea.vmem %s188, 48 [#allocation2]
        %374 = vst.msk [vmem:[%s373] sm:$0xff] %vm277, %v365
        %375 = vst.msk [vmem:[%s373 + $0x8] sm:$0xff] %vm277, %v368
        %376 = vst.msk [vmem:[%s373 + $0x10] sm:$0xff] %vm277, %v371
        %s377 = scalar_lea.vmem %s197, 12
        %v378 = vld [vmem:[%s377] sm:$0xf]
        %380 = vrot.lane.b32.xlu0 %v378, 1
        %v381 = vpop.permute.xlu0 %380
        %v383 = vsel %vm211, 0.0, %v381
        %v384 = vsel %vm213, %v383, 0.0
        %v386 = vrot.slane %v384, 4
        %387 = vrot.lane.b32.xlu0 %v386, 127
        %v388 = vpop.permute.xlu0 %387
        %390 = vrot.lane.b32.xlu0 %v384, 126
        %v391 = vpop.permute.xlu0 %390
        %v392 = vsel %vm222, %v384, %v388
        %v393 = vsel %vm222, %v391, 0
        %395 = vmatpush.msra.mxu0 0.0
        %396 = vmatpush.msra.mxu0 0.0
        %397 = vmatpush.msra.mxu0 0.0
        %398 = vmatpush.msra.mxu0 0.0
        %399 = vmatpush.msra.mxu0 0.0
        %400 = vmatpush.msra.mxu0 0.0
        %401 = vmatpush.msra.mxu0 0.0
        %402 = vmatpush.msra.mxu0 0.0
        %403 = vmatpush.msra.mxu0 0.0
        %404 = vmatpush.msra.mxu0 0.0
        %405 = vmatpush.msra.mxu0 0.0
        %406 = vmatpush.msra.mxu0 0.0
        %407 = vmatpush.msra.mxu0 0.0
        %408 = vmatpush.msra.mxu0 0.0
        %409 = vmatpush.msra.mxu0 %v393
        %410 = vmatpush.msra.mxu0 %v392
        %411 = vmatmul.f32.gmra.mxu0 %v241
        %v412 = vpop.f32.mrf.mxu0
        %v413 = vadd.f32 %v227, %v412
        %414 = vmatmul.f32.gmra.mxu0 %v244
        %v415 = vpop.f32.mrf.mxu0
        %v416 = vadd.f32 %v232, %v415
        %417 = vmatmul.f32.gmra.mxu0 %v247
        %v418 = vpop.f32.mrf.mxu0
        %v419 = vadd.f32 %v237, %v418
        %420 = vdwg.mxu0
        %s421 = scalar_lea.vmem %s188, 72 [#allocation2]
        %422 = vst.msk [vmem:[%s421] sm:$0xff] %vm277, %v413
        %423 = vst.msk [vmem:[%s421 + $0x8] sm:$0xff] %vm277, %v416
        %424 = vst.msk [vmem:[%s421 + $0x10] sm:$0xff] %vm277, %v419
        %s425 = sand.u32 %s109, 1
        %s426 = scalar_lea.sflag [#allocation3], %s425
        %s427 = sand.u32 %s109, 1
        %s428 = smul.addr %s427, 96
        %s429 = scalar_lea.vmem [#allocation2], %s428
        // Predicated region
        $region33: #{tpu_custom_call.1} parent=31 // pred_check
          %p430 = pneg %p119
        $region34: #{tpu_custom_call.1} parent=31 // pred_check_branch
          %432 = sbr.rel (%p430) target = $region36
        $region35: #{tpu_custom_call.1} parent=31 // pred_region
          %s433 = smul.u32 4, %s22
          %435 = vsyncadd %s426, 0
          %s436 = smul.addr %s433, 3
          %s437 = smul.addr %s21, 24
          %s438 = sadd.s32 %s436, %s437
          %s439 = smul.addr %s438, 8
          %s440 = scalar_lea.hbm %s3, %s439
          %s441 = sshll.u32 %s429, 4
          %s442 = int_to_ptr.vmem [resolvable:$true] %s441
          %s443 = sshll.u32 %s440, 4
          %s444 = int_to_ptr.hbm [resolvable:$true] %s443
          %449 = dma.vmem_to_hbm [thread:$0]  %s442, 1536, %s444, %s426, 128, 128, 8
        $region36: #{tpu_custom_call.1} parent=31 // pred_fallthru
          _
      $region32: #{tpu_custom_call.1} parent=5 // pred_fallthru
        _
      %p450 = scmp.le.s32.totalorder 2, %s12
      // Predicated region
      $region37: #{tpu_custom_call.1} parent=5 // pred_check
        %p451 = pneg %p450
      $region38: #{tpu_custom_call.1} parent=5 // pred_check_branch
        %453 = sbr.rel (%p451) target = $region40
      $region39: #{tpu_custom_call.1} parent=5 // pred_region
        %s454 = ssub.s32 %s12, 2
        // Predicated region
        $region41: #{tpu_custom_call.1} parent=39 // pred_check
          %p455 = pneg %p125
        $region42: #{tpu_custom_call.1} parent=39 // pred_check_branch
          %457 = sbr.rel (%p455) target = $region44
        $region43: #{tpu_custom_call.1} parent=39 // pred_region
          %s458 = sand.u32 %s110, 1
          %s459 = scalar_lea.sflag [#allocation3], %s458
          %s460 = sand.u32 %s110, 1
          %s461 = smul.addr %s460, 96
          %s462 = scalar_lea.vmem [#allocation2], %s461
          %464 = dma.done %s459, 1536
        $region44: #{tpu_custom_call.1} parent=39 // pred_fallthru
          _
      $region40: #{tpu_custom_call.1} parent=5 // pred_fallthru
        _
    $region6: #{tpu_custom_call.1} parent=1 // loop_footer
      %s16 = sadd.s32 1, %s12
    $region7: #{tpu_custom_call.1} parent=1 // loop_footer_branch
      %11 = sbr.rel target = $region3
    $region8: #{tpu_custom_call.1} parent=1 // loop_exit
      _
    %465 = vsyncpa [#allocation3], 1
    %s466 = scalar_lea.sflag [#allocation3], 1
    %467 = vsyncpa %s466, 1

</llo_original>
